<compile_context>
chip_gen: v5e
topology: v5e:2x2
jax: 0.10.0
libtpu: 0.0.40
codegen_flags: <defaults>
</compile_context>

<pallas_src>
import jax
import jax.numpy as jnp
from jax.experimental import pallas as pl
from jax.experimental.pallas import tpu as pltpu


def _round_up(a: int, b: int) -> int:
    return (a + b - 1) // b * b


def _vmem_budget_bytes() -> int:
    """~75% of physical VMEM when detectable; 48 MiB fallback (safe on v7x/v6e/v5e)."""
    try:
        info = pltpu.get_tpu_info()
        cap = getattr(info, "vmem_capacity_bytes", None) or getattr(info, "vmem_bytes", None)
        if cap:
            return int(cap) * 3 // 4
    except Exception:
        pass
    return 48 * 1024 * 1024


def _footprint_bytes(tm: int, Cp: int, tf: int, out_bytes: int = 4) -> int:
    # Double-buffered bf16 inputs + double-buffered output + fp32 accumulator scratch.
    x_b = 2 * tm * Cp * 2
    w13_b = 2 * Cp * (2 * tf) * 2
    w2_b = 2 * tf * Cp * 2
    out_b = 2 * tm * Cp * out_bytes
    acc_b = tm * Cp * 4
    return x_b + w13_b + w2_b + out_b + acc_b


def _select_tiles(Cp: int, F: int, budget: int, tm_cap: int):
    """Pick (tm_max, tf) maximizing tm*tf (tie-break: larger tm) within the VMEM budget."""
    tf_cap = _round_up(F, 128)
    best = None
    for tm in (512, 256, 128, 64, 32, 16):
        if tm > tm_cap:
            continue
        for tf in (2048, 1024, 512, 256, 128):
            if tf > tf_cap:
                continue
            if _footprint_bytes(tm, Cp, tf) <= budget:
                cand = (tm * tf, tm, tf)
                if best is None or cand > best:
                    best = cand
    if best is None:
        return 16, 128
    return best[1], best[2]


def prepare_cmix_llama_weights(w1, w2, w3, *, compute_dtype=jnp.bfloat16,
                               max_rows_per_tile=512, vmem_budget_bytes=None):
    """One-time weight preparation (call once at init, NOT per forward).

    w1, w3: [F, C]   w2: [C, F]   (PyTorch nn.Linear layout, weight = [out, in]).
    Pads to lane-dense sizes, casts to bf16, and fuses W1/W3 into a tile-interleaved
    [Cp, 2*Fp] matrix so the kernel does a single up-projection matmul per step.
    """
    F, C = w1.shape
    assert w3.shape == (F, C) and w2.shape == (C, F)

    budget = int(vmem_budget_bytes) if vmem_budget_bytes is not None else _vmem_budget_bytes()
    Cp = _round_up(C, 128)
    tm_cap = max(16, min(512, _round_up(max_rows_per_tile, 16)))
    tm_max, tf = _select_tiles(Cp, F, budget, tm_cap)
    Fp = _round_up(F, tf)  # pad hidden dim so tf divides it exactly (zero cols are inert)

    def pad_to(w, rows, cols):
        w = w.astype(compute_dtype)
        if w.shape != (rows, cols):
            w = jnp.pad(w, ((0, rows - w.shape[0]), (0, cols - w.shape[1])))
        return w

    w1p = pad_to(w1.T, Cp, Fp)   # [Cp, Fp]
    w3p = pad_to(w3.T, Cp, Fp)   # [Cp, Fp]
    w2p = pad_to(w2.T, Fp, Cp)   # [Fp, Cp]

    # Interleave W1/W3 per tf-tile: block f of width 2*tf == [W1 tile f | W3 tile f].
    nF = Fp // tf
    w13p = jnp.concatenate(
        [w1p.reshape(Cp, nF, tf), w3p.reshape(Cp, nF, tf)], axis=-1
    ).reshape(Cp, 2 * Fp)

    return dict(w13p=w13p, w2p=w2p, C=C, F=F, Cp=Cp, Fp=Fp, tf=tf,
                tm_max=tm_max, vmem_budget=budget, compute_dtype=compute_dtype)


def _swiglu_kernel(x_ref, w13_ref, w2_ref, o_ref, acc_ref):
    # x_ref : [tm, Cp] bf16     w13_ref : [Cp, 2*tf] bf16     w2_ref : [tf, Cp] bf16
    # o_ref : [tm, Cp] x.dtype  acc_ref : [tm, Cp] f32 (resident across the f axis)
    f = pl.program_id(1)

    @pl.when(f == 0)
    def _():
        acc_ref[...] = jnp.zeros_like(acc_ref)

    tf = w2_ref.shape[0]
    # Single fused up-projection; h1/h3 are lane-aligned static slices of the result.
    h13 = jnp.dot(x_ref[...], w13_ref[...], preferred_element_type=jnp.float32)  # [tm, 2*tf]
    h1 = h13[:, :tf]
    h3 = h13[:, tf:]
    # silu(h1) = h1 * sigmoid(h1); exp + approx reciprocal both land on the EUP slot.
    sig = pl.reciprocal(1.0 + jnp.exp(-h1), approx=True)
    h = (h1 * sig * h3).astype(w2_ref.dtype)                                      # bf16
    acc_ref[...] += jnp.dot(h, w2_ref[...], preferred_element_type=jnp.float32)

    @pl.when(f == pl.num_programs(1) - 1)
    def _():
        o_ref[...] = acc_ref[...].astype(o_ref.dtype)


def cmix_llama_forward(params, x, last_state):
    """x: [B, T, C]. Returns (out [B, T, C] in x.dtype, last_state passthrough)."""
    B, T, C = x.shape
    assert C == params["C"], "channel dim mismatch with prepared weights"
    M = B * T
    Cp, Fp, tf = params["Cp"], params["Fp"], params["tf"]
    compute_dtype = params["compute_dtype"]

    # Row tile: multiple of 16 (bf16 sublane packing), up to the prep-time maximum.
    tm = max(16, min(params["tm_max"], _round_up(M, 16)))
    Mp = _round_up(M, tm)

    x2d = x.reshape(M, C)
    if x2d.dtype != compute_dtype:
        x2d = x2d.astype(compute_dtype)
    if (Mp, Cp) != (M, C):
        x2d = jnp.pad(x2d, ((0, Mp - M), (0, Cp - C)))  # skipped when already aligned

    grid = (Mp // tm, Fp // tf)

    out2d = pl.pallas_call(
        _swiglu_kernel,
        out_shape=jax.ShapeDtypeStruct((Mp, Cp), x.dtype),
        grid_spec=pltpu.PrefetchScalarGridSpec(
            num_scalar_prefetch=0,
            grid=grid,
            in_specs=[
                pl.BlockSpec((tm, Cp), lambda i, f: (i, 0)),       # x rows (resident over f)
                pl.BlockSpec((Cp, 2 * tf), lambda i, f: (0, f)),   # fused [W1|W3] tf-slice
                pl.BlockSpec((tf, Cp), lambda i, f: (f, 0)),       # W2 tf-row slice
            ],
            out_specs=pl.BlockSpec((tm, Cp), lambda i, f: (i, 0)),
            scratch_shapes=[pltpu.VMEM((tm, Cp), jnp.float32)],
        ),
        compiler_params=pltpu.CompilerParams(
            dimension_semantics=("parallel", "arbitrary"),
            vmem_limit_bytes=int(params["vmem_budget"]),
        ),
    )(x2d, params["w13p"], params["w2p"])

    out = out2d if (Mp, Cp) == (M, C) else out2d[:M, :C]
    out = out.reshape(B, T, C)
    # TODO(synk): v7x decode (single row tile) could split the F reduction across both
    # TensorCores with per-core partial accumulators + a VMEM_SHARED combine.
    return out, last_state


if __name__ == "__main__":
    # module config: args.n_embd = 32  ->  dim_ffn = 32*4*2 // 3 // 32 * 32 = 64
    n_embd = 32
    dim_ffn = n_embd * 4 * 2 // 3 // 32 * 32  # 64
    B, T = 2, 8

    key = jax.random.PRNGKey(0)
    kx, k1, k2, k3 = jax.random.split(key, 4)

    x = jax.random.normal(kx, (B, T, n_embd), dtype=jnp.float32)
    # nn.Linear(in, out) weight layout is [out, in].
    w1 = jax.random.normal(k1, (dim_ffn, n_embd), dtype=jnp.float32) * 0.02
    w2 = jax.random.normal(k2, (n_embd, dim_ffn), dtype=jnp.float32) * 0.02
    w3 = jax.random.normal(k3, (dim_ffn, n_embd), dtype=jnp.float32) * 0.02

    # dummy ChannelMixState (passed through unchanged)
    last_state = jnp.zeros((B, n_embd), dtype=jnp.float32)

    # One-time weight prep (padding / bf16 cast / W1-W3 fusion hoisted out of forward).
    params = prepare_cmix_llama_weights(w1, w2, w3)

    out, state_out = cmix_llama_forward(params, x, last_state)
    out = jax.block_until_ready(out)
    assert out.shape == (B, T, n_embd)
    assert state_out is last_state

    # Reference 1: same bf16 operands / fp32 accumulation path (tight tolerance).
    x2d = x.reshape(-1, n_embd)
    xb = x2d.astype(jnp.bfloat16)
    w1b, w3b, w2b = (w.T.astype(jnp.bfloat16) for w in (w1, w3, w2))
    h1 = jnp.dot(xb, w1b, preferred_element_type=jnp.float32)
    h3 = jnp.dot(xb, w3b, preferred_element_type=jnp.float32)
    hb = (jax.nn.silu(h1) * h3).astype(jnp.bfloat16)
    ref_bf16 = jnp.dot(hb, w2b, preferred_element_type=jnp.float32).reshape(B, T, n_embd)
    assert jnp.allclose(out.astype(jnp.float32), ref_bf16, atol=1e-4, rtol=2e-2), \
        "mismatch vs bf16 reference"

    # Reference 2: full fp32 module semantics (loose tolerance, bf16 rounding error).
    ref_fp32 = ((jax.nn.silu(x2d @ w1.T) * (x2d @ w3.T)) @ w2.T).reshape(B, T, n_embd)
    assert jnp.allclose(out.astype(jnp.float32), ref_fp32, atol=1e-3, rtol=5e-2), \
        "mismatch vs fp32 reference"

    print("KERNEL_OK")
</pallas_src>

<mosaic_0001>
module attributes {stable_mosaic.version = 11 : i64} {
  func.func @_swiglu_kernel(%arg0: i32, %arg1: i32, %arg2: memref<16x128xbf16, #tpu.memory_space<vmem>>, %arg3: memref<128x256xbf16, #tpu.memory_space<vmem>>, %arg4: memref<128x128xbf16, #tpu.memory_space<vmem>>, %arg5: memref<16x128xf32, #tpu.memory_space<vmem>>, %arg6: memref<16x128xf32, #tpu.memory_space<vmem>>) attributes {dimension_semantics = [#tpu.dimension_semantics<parallel>, #tpu.dimension_semantics<arbitrary>], iteration_bounds = array<i64: 1, 1>, scalar_prefetch = 0 : i64, scratch_operands = 1 : i64, tpu.core_type = #tpu.core_type<tc>, window_params = [{transform_indices = @transform_0, window_bounds = array<i64: 16, 128>}, {transform_indices = @transform_1, window_bounds = array<i64: 128, 256>}, {transform_indices = @transform_2, window_bounds = array<i64: 128, 128>}, {transform_indices = @transform_3, window_bounds = array<i64: 16, 128>}]} {
    %c0_i32 = arith.constant 0 : i32
    %0 = arith.cmpi eq, %arg1, %c0_i32 : i32
    %1 = arith.extui %0 : i1 to i32
    %c0_i32_0 = arith.constant 0 : i32
    %2 = arith.cmpi ne, %1, %c0_i32_0 : i32
    scf.if %2 {
      %cst_15 = arith.constant 0.000000e+00 : f32
      %25 = vector.broadcast %cst_15 : f32 to vector<16x128xf32>
      %c0_16 = arith.constant 0 : index
      %c0_17 = arith.constant 0 : index
      %26 = vector.load %arg6[%c0_16, %c0_17] : memref<16x128xf32, #tpu.memory_space<vmem>>, vector<16x128xf32>
      tpu.vector_store %arg6[%c0_16, %c0_17], %25 {strides = array<i32>} : memref<16x128xf32, #tpu.memory_space<vmem>>, vector<16x128xf32>,
    } else {
    }
    %c0 = arith.constant 0 : index
    %c0_1 = arith.constant 0 : index
    %3 = vector.load %arg2[%c0, %c0_1] : memref<16x128xbf16, #tpu.memory_space<vmem>>, vector<16x128xbf16>
    %c0_2 = arith.constant 0 : index
    %c0_3 = arith.constant 0 : index
    %4 = vector.load %arg3[%c0_2, %c0_3] : memref<128x256xbf16, #tpu.memory_space<vmem>>, vector<128x256xbf16>
    %cst = arith.constant dense<0.000000e+00> : vector<16x256xf32>
    %5 = tpu.matmul %3, %4, %cst {dimension_numbers = #tpu.dot_dimension_numbers<[1], [0], [0], [1], [0, 0, 1, 1], [], []>} : vector<16x128xbf16>, vector<128x256xbf16>, vector<16x256xf32> -> vector<16x256xf32>
    %6 = vector.extract_strided_slice %5 {offsets = [0, 0], sizes = [16, 128], strides = [1, 1]} : vector<16x256xf32> to vector<16x128xf32>
    %7 = vector.extract_strided_slice %5 {offsets = [0, 128], sizes = [16, 128], strides = [1, 1]} : vector<16x256xf32> to vector<16x128xf32>
    %cst_4 = arith.constant 0.000000e+00 : f32
    %8 = vector.broadcast %cst_4 : f32 to vector<16x128xf32>
    %9 = arith.subf %8, %6 : vector<16x128xf32>
    %10 = math.exp %9 : vector<16x128xf32>
    %cst_5 = arith.constant 1.000000e+00 : f32
    %11 = vector.broadcast %cst_5 : f32 to vector<16x128xf32>
    %12 = arith.addf %11, %10 : vector<16x128xf32>
    %13 = tpu.reciprocal %12 {approx = true} : vector<16x128xf32> -> vector<16x128xf32>
    %14 = arith.mulf %6, %13 : vector<16x128xf32>
    %15 = arith.mulf %14, %7 : vector<16x128xf32>
    %16 = arith.truncf %15 : vector<16x128xf32> to vector<16x128xbf16>
    %c0_6 = arith.constant 0 : index
    %c0_7 = arith.constant 0 : index
    %17 = vector.load %arg6[%c0_6, %c0_7] : memref<16x128xf32, #tpu.memory_space<vmem>>, vector<16x128xf32>
    %c0_8 = arith.constant 0 : index
    %c0_9 = arith.constant 0 : index
    %18 = vector.load %arg4[%c0_8, %c0_9] : memref<128x128xbf16, #tpu.memory_space<vmem>>, vector<128x128xbf16>
    %cst_10 = arith.constant dense<0.000000e+00> : vector<16x128xf32>
    %19 = tpu.matmul %16, %18, %cst_10 {dimension_numbers = #tpu.dot_dimension_numbers<[1], [0], [0], [1], [0, 0, 1, 1], [], []>} : vector<16x128xbf16>, vector<128x128xbf16>, vector<16x128xf32> -> vector<16x128xf32>
    %20 = arith.addf %17, %19 : vector<16x128xf32>
    %c0_11 = arith.constant 0 : index
    %c0_12 = arith.constant 0 : index
    %21 = vector.load %arg6[%c0_11, %c0_12] : memref<16x128xf32, #tpu.memory_space<vmem>>, vector<16x128xf32>
    tpu.vector_store %arg6[%c0_11, %c0_12], %20 {strides = array<i32>} : memref<16x128xf32, #tpu.memory_space<vmem>>, vector<16x128xf32>,
    %c0_i32_13 = arith.constant 0 : i32
    %22 = arith.cmpi eq, %arg1, %c0_i32_13 : i32
    %23 = arith.extui %22 : i1 to i32
    %c0_i32_14 = arith.constant 0 : i32
    %24 = arith.cmpi ne, %23, %c0_i32_14 : i32
    scf.if %24 {
      %c0_15 = arith.constant 0 : index
      %c0_16 = arith.constant 0 : index
      %25 = vector.load %arg6[%c0_15, %c0_16] : memref<16x128xf32, #tpu.memory_space<vmem>>, vector<16x128xf32>
      %c0_17 = arith.constant 0 : index
      %c0_18 = arith.constant 0 : index
      %26 = vector.load %arg5[%c0_17, %c0_18] : memref<16x128xf32, #tpu.memory_space<vmem>>, vector<16x128xf32>
      tpu.vector_store %arg5[%c0_17, %c0_18], %25 {strides = array<i32>} : memref<16x128xf32, #tpu.memory_space<vmem>>, vector<16x128xf32>,
    } else {
    }
    return
  }
  func.func @transform_0(%arg0: i32, %arg1: i32) -> (i32, i32) {
    %c0_i32 = arith.constant 0 : i32
    %c0_i32_0 = arith.constant 0 : i32
    return %arg0, %c0_i32 : i32, i32
  }
  func.func @transform_1(%arg0: i32, %arg1: i32) -> (i32, i32) {
    %c0_i32 = arith.constant 0 : i32
    %c0_i32_0 = arith.constant 0 : i32
    return %c0_i32, %arg1 : i32, i32
  }
  func.func @transform_2(%arg0: i32, %arg1: i32) -> (i32, i32) {
    %c0_i32 = arith.constant 0 : i32
    %c0_i32_0 = arith.constant 0 : i32
    return %arg1, %c0_i32 : i32, i32
  }
  func.func @transform_3(%arg0: i32, %arg1: i32) -> (i32, i32) {
    %c0_i32 = arith.constant 0 : i32
    %c0_i32_0 = arith.constant 0 : i32
    return %arg0, %c0_i32 : i32, i32
  }
}

</mosaic_0001>

<llo_original>
// kernel: tpu_custom_call.1
$region0: #{tpu_custom_call.1}
  #allocation0 [shape = 'u32[]', space=smem, size = 0x4, offset = 0x4, fixed_abs, tag = 'smem constant byte address 0x4 - core index']
  #allocation1 [shape = 'u32[72,128]{1,0:T(1,128)}', space=vmem, size = 0x9000, scoped, tag = 'internal scratch']
  #allocation2 [shape = 'f32[16,128]{1,0:T(8,128)}', space=vmem, size = 0x2000, scoped, tag = 'scratch operand']
  %s0 = inlined_call_operand.hbm [shape: bf16[16,128], index: 0, kind: input, shape index: {}]
  %s1 = inlined_call_operand.hbm [shape: bf16[128,256], index: 1, kind: input, shape index: {}]
  %s2 = inlined_call_operand.hbm [shape: bf16[128,128], index: 2, kind: input, shape index: {}]
  %s3 = inlined_call_operand.hbm [shape: f32[16,128], index: 3, kind: output, shape index: {}]
  %s4 = sld [smem:[#allocation0]]
  $region42: #{tpu_custom_call.1} parent=0
    _
  %s6 = ssub.s32 1, %s4
  %s7 = scalar_select 0, %s6, %s4
  $region1: #{tpu_custom_call.1} parent=0
    #allocation3 [shape = 'u8[4096]{0}', space=vmem, size = 0x1000, scoped, tag = 'input window, operand 0, single buffered']
    #allocation4 [shape = 's32[1]{0}', space=sflag, size = 0x4, scoped, tag = 'scoped memory for tpu_custom_call.1']
    #allocation5 [shape = 's32[1]{0}', space=sflag, size = 0x4, scoped, tag = 'scoped memory for tpu_custom_call.1']
    #allocation6 [shape = 'u8[65536]{0}', space=vmem, size = 0x10000, scoped, tag = 'input window, operand 1, single buffered']
    #allocation7 [shape = 's32[1]{0}', space=sflag, size = 0x4, scoped, tag = 'scoped memory for tpu_custom_call.1']
    #allocation8 [shape = 'u8[32768]{0}', space=vmem, size = 0x8000, scoped, tag = 'input window, operand 2, single buffered']
    #allocation9 [shape = 'u8[8192]{0}', space=vmem, size = 0x2000, scoped, tag = 'output window, operand 0, single buffered']
    %8 = vsyncpa [#allocation4], 0
    %9 = vsyncpa [#allocation7], 0
    %10 = vsyncpa [#allocation5], 0
    // Predicated region
    $region2: #{tpu_custom_call.1} parent=1 // pred_check
      _
    $region3: #{tpu_custom_call.1} parent=1 // pred_check_branch
      %12 = sbr.rel (0) target = $region5
    $region4: #{tpu_custom_call.1} parent=1 // pred_region
      %14 = vsyncadd [#allocation4], 0
      %s15 = sshll.u32 %s0, 4
      %s16 = int_to_ptr.hbm [resolvable:$true] %s15
      %s17 = sshll.u32 [#allocation3], 4
      %s18 = int_to_ptr.vmem [resolvable:$true] %s17
      %23 = dma.hbm_to_vmem [thread:$0]  %s16, 128, %s18, [#allocation4], 64, 64, 4
    $region5: #{tpu_custom_call.1} parent=1 // pred_fallthru
      _
    // Predicated region
    $region6: #{tpu_custom_call.1} parent=1 // pred_check
      _
    $region7: #{tpu_custom_call.1} parent=1 // pred_check_branch
      %25 = sbr.rel (0) target = $region9
    $region8: #{tpu_custom_call.1} parent=1 // pred_region
      %27 = vsyncadd [#allocation7], 0
      %s28 = sshll.u32 %s1, 4
      %s29 = int_to_ptr.hbm [resolvable:$true] %s28
      %s30 = sshll.u32 [#allocation6], 4
      %s31 = int_to_ptr.vmem [resolvable:$true] %s30
      %36 = dma.hbm_to_vmem [thread:$0]  %s29, 2048, %s31, [#allocation7], 128, 128, 8
    $region9: #{tpu_custom_call.1} parent=1 // pred_fallthru
      _
    // Predicated region
    $region10: #{tpu_custom_call.1} parent=1 // pred_check
      _
    $region11: #{tpu_custom_call.1} parent=1 // pred_check_branch
      %38 = sbr.rel (0) target = $region13
    $region12: #{tpu_custom_call.1} parent=1 // pred_region
      %40 = vsyncadd [#allocation7], 0
      %s41 = sshll.u32 %s2, 4
      %s42 = int_to_ptr.hbm [resolvable:$true] %s41
      %s43 = sshll.u32 [#allocation8], 4
      %s44 = int_to_ptr.vmem [resolvable:$true] %s43
      %49 = dma.hbm_to_vmem [thread:$0]  %s42, 1024, %s44, [#allocation7], 64, 64, 4
    $region13: #{tpu_custom_call.1} parent=1 // pred_fallthru
      _
    // Predicated region
    $region14: #{tpu_custom_call.1} parent=1 // pred_check
      _
    $region15: #{tpu_custom_call.1} parent=1 // pred_check_branch
      %51 = sbr.rel (0) target = $region17
    $region16: #{tpu_custom_call.1} parent=1 // pred_region
      %53 = dma.done [#allocation4], 128
    $region17: #{tpu_custom_call.1} parent=1 // pred_fallthru
      _
    // Predicated region
    $region18: #{tpu_custom_call.1} parent=1 // pred_check
      _
    $region19: #{tpu_custom_call.1} parent=1 // pred_check_branch
      %55 = sbr.rel (0) target = $region21
    $region20: #{tpu_custom_call.1} parent=1 // pred_region
      %57 = dma.done [#allocation7], 2048
    $region21: #{tpu_custom_call.1} parent=1 // pred_fallthru
      _
    // Predicated region
    $region22: #{tpu_custom_call.1} parent=1 // pred_check
      _
    $region23: #{tpu_custom_call.1} parent=1 // pred_check_branch
      %59 = sbr.rel (0) target = $region25
    $region24: #{tpu_custom_call.1} parent=1 // pred_region
      %61 = dma.done [#allocation7], 1024
    $region25: #{tpu_custom_call.1} parent=1 // pred_fallthru
      _
    %p62 = scmp.eq.s32.totalorder 0, 0
    // Predicated region
    $region26: #{tpu_custom_call.1} parent=1 // pred_check
      %p63 = pneg %p62
    $region27: #{tpu_custom_call.1} parent=1 // pred_check_branch
      %65 = sbr.rel (%p63) target = $region29
    $region28: #{tpu_custom_call.1} parent=1 // pred_region
      %66 = vst [vmem:[#allocation2] sm:$0xff] 0.0
      %67 = vst [vmem:[#allocation2 + $0x8] sm:$0xff] 0.0
    $region29: #{tpu_custom_call.1} parent=1 // pred_fallthru
      _
    %v68 = vld [vmem:[#allocation3] sm:$0xf]
    %v69 = vld [vmem:[#allocation3 + $0x4] sm:$0xf]
    %v70 = vld [vmem:[#allocation6] sm:$0xff]
    %v71 = vld [vmem:[#allocation6 + $0x8] sm:$0xff]
    %v72 = vld [vmem:[#allocation6 + $0x10] sm:$0xff]
    %v73 = vld [vmem:[#allocation6 + $0x18] sm:$0xff]
    %v74 = vld [vmem:[#allocation6 + $0x20] sm:$0xff]
    %v75 = vld [vmem:[#allocation6 + $0x28] sm:$0xff]
    %v76 = vld [vmem:[#allocation6 + $0x30] sm:$0xff]
    %v77 = vld [vmem:[#allocation6 + $0x38] sm:$0xff]
    %v78 = vld [vmem:[#allocation6 + $0x40] sm:$0xff]
    %v79 = vld [vmem:[#allocation6 + $0x48] sm:$0xff]
    %v80 = vld [vmem:[#allocation6 + $0x50] sm:$0xff]
    %v81 = vld [vmem:[#allocation6 + $0x58] sm:$0xff]
    %v82 = vld [vmem:[#allocation6 + $0x60] sm:$0xff]
    %v83 = vld [vmem:[#allocation6 + $0x68] sm:$0xff]
    %v84 = vld [vmem:[#allocation6 + $0x70] sm:$0xff]
    %v85 = vld [vmem:[#allocation6 + $0x78] sm:$0xff]
    %v88 = vunpack.c.l.b16 %v68
    %v89 = vunpack.c.l.b16 %v69
    %v90 = vpack.c.b16 %v89, %v88
    %v108 = vunpack.c.l.b16 %v70
    %v109 = vunpack.c.h.b16 %v70
    %v110 = vunpack.c.l.b16 %v71
    %v111 = vunpack.c.h.b16 %v71
    %v112 = vunpack.c.l.b16 %v72
    %v113 = vunpack.c.h.b16 %v72
    %v114 = vunpack.c.l.b16 %v73
    %v115 = vunpack.c.h.b16 %v73
    %v116 = vunpack.c.l.b16 %v74
    %v117 = vunpack.c.h.b16 %v74
    %v118 = vunpack.c.l.b16 %v75
    %v119 = vunpack.c.h.b16 %v75
    %v120 = vunpack.c.l.b16 %v76
    %v121 = vunpack.c.h.b16 %v76
    %v122 = vunpack.c.l.b16 %v77
    %v123 = vunpack.c.h.b16 %v77
    %v124 = vunpack.c.l.b16 %v78
    %v125 = vunpack.c.h.b16 %v78
    %v126 = vunpack.c.l.b16 %v79
    %v127 = vunpack.c.h.b16 %v79
    %v128 = vunpack.c.l.b16 %v80
    %v129 = vunpack.c.h.b16 %v80
    %v130 = vunpack.c.l.b16 %v81
    %v131 = vunpack.c.h.b16 %v81
    %v132 = vunpack.c.l.b16 %v82
    %v133 = vunpack.c.h.b16 %v82
    %v134 = vunpack.c.l.b16 %v83
    %v135 = vunpack.c.h.b16 %v83
    %v136 = vunpack.c.l.b16 %v84
    %v137 = vunpack.c.h.b16 %v84
    %v138 = vunpack.c.l.b16 %v85
    %v139 = vunpack.c.h.b16 %v85
    %v140 = vpack.c.b16 %v110, %v108
    %v141 = vpack.c.b16 %v111, %v109
    %v142 = vpack.c.b16 %v114, %v112
    %v143 = vpack.c.b16 %v115, %v113
    %v144 = vpack.c.b16 %v118, %v116
    %v145 = vpack.c.b16 %v119, %v117
    %v146 = vpack.c.b16 %v122, %v120
    %v147 = vpack.c.b16 %v123, %v121
    %v148 = vpack.c.b16 %v126, %v124
    %v149 = vpack.c.b16 %v127, %v125
    %v150 = vpack.c.b16 %v130, %v128
    %v151 = vpack.c.b16 %v131, %v129
    %v152 = vpack.c.b16 %v134, %v132
    %v153 = vpack.c.b16 %v135, %v133
    %v154 = vpack.c.b16 %v138, %v136
    %v155 = vpack.c.b16 %v139, %v137
    %172 = vmatpush.bf16.msra.mxu0 %v154
    %173 = vmatpush.bf16.msra.mxu0 %v152
    %174 = vmatpush.bf16.msra.mxu0 %v150
    %175 = vmatpush.bf16.msra.mxu0 %v148
    %176 = vmatpush.bf16.msra.mxu0 %v146
    %177 = vmatpush.bf16.msra.mxu0 %v144
    %178 = vmatpush.bf16.msra.mxu0 %v142
    %179 = vmatpush.bf16.msra.mxu0 %v140
    %180 = vmatmul.bf16.gmra.mxu0 %v90
    %v181 = vpop.f32.mrf.mxu0
    %v182 = vadd.f32 0.0, %v181
    %v183 = vpop.f32.mrf.mxu0
    %v184 = vadd.f32 0.0, %v183
    %185 = vdwg.mxu0
    %186 = vmatpush.bf16.msra.mxu0 %v155
    %187 = vmatpush.bf16.msra.mxu0 %v153
    %188 = vmatpush.bf16.msra.mxu0 %v151
    %189 = vmatpush.bf16.msra.mxu0 %v149
    %190 = vmatpush.bf16.msra.mxu0 %v147
    %191 = vmatpush.bf16.msra.mxu0 %v145
    %192 = vmatpush.bf16.msra.mxu0 %v143
    %193 = vmatpush.bf16.msra.mxu0 %v141
    %194 = vmatmul.bf16.gmra.mxu0 %v90
    %v195 = vpop.f32.mrf.mxu0
    %v196 = vadd.f32 0.0, %v195
    %v197 = vpop.f32.mrf.mxu0
    %v198 = vadd.f32 0.0, %v197
    %199 = vdwg.mxu0
    %v200 = vsub.f32 0.0, %v182
    %v201 = vsub.f32 0.0, %v184
    %v202 = vmul.f32 %v200, 1.442695
    %v203 = vpow.pop %v202
    %v204 = vmul.f32 %v201, 1.442695
    %v205 = vpow.pop %v204
    %v206 = vadd.f32 %v203, 1.0
    %v207 = vadd.f32 %v205, 1.0
    %v208 = vrcp.pop %v206
    %v209 = vrcp.pop %v207
    %v210 = vmul.f32 %v182, %v208
    %v211 = vmul.f32 %v184, %v209
    %v212 = vmul.f32 %v210, %v196
    %v213 = vmul.f32 %v211, %v198
    %v214 = vpack.c.bf16 %v213, %v212
    %v215 = vld [vmem:[#allocation2] sm:$0xff]
    %v216 = vld [vmem:[#allocation2 + $0x8] sm:$0xff]
    %v217 = vld [vmem:[#allocation8] sm:$0xf]
    %v218 = vld [vmem:[#allocation8 + $0x4] sm:$0xf]
    %v219 = vld [vmem:[#allocation8 + $0x8] sm:$0xf]
    %v220 = vld [vmem:[#allocation8 + $0xc] sm:$0xf]
    %v221 = vld [vmem:[#allocation8 + $0x10] sm:$0xf]
    %v222 = vld [vmem:[#allocation8 + $0x14] sm:$0xf]
    %v223 = vld [vmem:[#allocation8 + $0x18] sm:$0xf]
    %v224 = vld [vmem:[#allocation8 + $0x1c] sm:$0xf]
    %v225 = vld [vmem:[#allocation8 + $0x20] sm:$0xf]
    %v226 = vld [vmem:[#allocation8 + $0x24] sm:$0xf]
    %v227 = vld [vmem:[#allocation8 + $0x28] sm:$0xf]
    %v228 = vld [vmem:[#allocation8 + $0x2c] sm:$0xf]
    %v229 = vld [vmem:[#allocation8 + $0x30] sm:$0xf]
    %v230 = vld [vmem:[#allocation8 + $0x34] sm:$0xf]
    %v231 = vld [vmem:[#allocation8 + $0x38] sm:$0xf]
    %v232 = vld [vmem:[#allocation8 + $0x3c] sm:$0xf]
    %v249 = vunpack.c.l.b16 %v217
    %v250 = vunpack.c.l.b16 %v218
    %v251 = vunpack.c.l.b16 %v219
    %v252 = vunpack.c.l.b16 %v220
    %v253 = vunpack.c.l.b16 %v221
    %v254 = vunpack.c.l.b16 %v222
    %v255 = vunpack.c.l.b16 %v223
    %v256 = vunpack.c.l.b16 %v224
    %v257 = vunpack.c.l.b16 %v225
    %v258 = vunpack.c.l.b16 %v226
    %v259 = vunpack.c.l.b16 %v227
    %v260 = vunpack.c.l.b16 %v228
    %v261 = vunpack.c.l.b16 %v229
    %v262 = vunpack.c.l.b16 %v230
    %v263 = vunpack.c.l.b16 %v231
    %v264 = vunpack.c.l.b16 %v232
    %v265 = vpack.c.b16 %v250, %v249
    %v266 = vpack.c.b16 %v252, %v251
    %v267 = vpack.c.b16 %v254, %v253
    %v268 = vpack.c.b16 %v256, %v255
    %v269 = vpack.c.b16 %v258, %v257
    %v270 = vpack.c.b16 %v260, %v259
    %v271 = vpack.c.b16 %v262, %v261
    %v272 = vpack.c.b16 %v264, %v263
    %281 = vmatpush.bf16.msra.mxu0 %v272
    %282 = vmatpush.bf16.msra.mxu0 %v271
    %283 = vmatpush.bf16.msra.mxu0 %v270
    %284 = vmatpush.bf16.msra.mxu0 %v269
    %285 = vmatpush.bf16.msra.mxu0 %v268
    %286 = vmatpush.bf16.msra.mxu0 %v267
    %287 = vmatpush.bf16.msra.mxu0 %v266
    %288 = vmatpush.bf16.msra.mxu0 %v265
    %289 = vmatmul.bf16.gmra.mxu0 %v214
    %v290 = vpop.f32.mrf.mxu0
    %v291 = vadd.f32 0.0, %v290
    %v292 = vpop.f32.mrf.mxu0
    %v293 = vadd.f32 0.0, %v292
    %294 = vdwg.mxu0
    %v295 = vadd.f32 %v215, %v291
    %v296 = vadd.f32 %v216, %v293
    %297 = vst [vmem:[#allocation2] sm:$0xff] %v295
    %298 = vst [vmem:[#allocation2 + $0x8] sm:$0xff] %v296
    // Predicated region
    $region30: #{tpu_custom_call.1} parent=1 // pred_check
      %p299 = pneg %p62
    $region31: #{tpu_custom_call.1} parent=1 // pred_check_branch
      %301 = sbr.rel (%p299) target = $region33
    $region32: #{tpu_custom_call.1} parent=1 // pred_region
      %v302 = vld [vmem:[#allocation2] sm:$0xff]
      %v303 = vld [vmem:[#allocation2 + $0x8] sm:$0xff]
      %304 = vst [vmem:[#allocation9] sm:$0xff] %v302
      %305 = vst [vmem:[#allocation9 + $0x8] sm:$0xff] %v303
    $region33: #{tpu_custom_call.1} parent=1 // pred_fallthru
      _
    // Predicated region
    $region34: #{tpu_custom_call.1} parent=1 // pred_check
      _
    $region35: #{tpu_custom_call.1} parent=1 // pred_check_branch
      %307 = sbr.rel (0) target = $region37
    $region36: #{tpu_custom_call.1} parent=1 // pred_region
      %309 = vsyncadd [#allocation5], 0
      %s310 = sshll.u32 [#allocation9], 4
      %s311 = int_to_ptr.vmem [resolvable:$true] %s310
      %s312 = sshll.u32 %s3, 4
      %s313 = int_to_ptr.hbm [resolvable:$true] %s312
      %318 = dma.vmem_to_hbm [thread:$0]  %s311, 256, %s313, [#allocation5], 128, 128, 8
    $region37: #{tpu_custom_call.1} parent=1 // pred_fallthru
      _
    // Predicated region
    $region38: #{tpu_custom_call.1} parent=1 // pred_check
      _
    $region39: #{tpu_custom_call.1} parent=1 // pred_check_branch
      %320 = sbr.rel (0) target = $region41
    $region40: #{tpu_custom_call.1} parent=1 // pred_region
      %322 = dma.done [#allocation5], 256
    $region41: #{tpu_custom_call.1} parent=1 // pred_fallthru
      _
    %323 = vsyncpa [#allocation4], 1
    %324 = vsyncpa [#allocation7], 1
    %325 = vsyncpa [#allocation5], 1

</llo_original>
